<compile_context>
chip_gen: v6e
topology: v6e:2x2x1
jax: 0.10.0
libtpu: 0.0.40
codegen_flags: <defaults>
</compile_context>

<pallas_src>
import numpy as np
import jax
import jax.numpy as jnp
from jax.experimental import pallas as pl
from jax.experimental.pallas import tpu as pltpu

_NEG = np.float32(-1e30)   # kills off-block / padded entries via the ReLU
_S2_PAD = 128              # stacked pyramid dim padded to one full vreg lane width


# ---------------------------------------------------------------------------
# static, shape-dependent pooling / upsampling matrices (host-side)
# ---------------------------------------------------------------------------
def _adaptive_pool_matrix(out_size, in_size):
    """P[i, p] = 1/|bin_i| if p in bin_i (PyTorch AdaptiveAvgPool binning)."""
    P = np.zeros((out_size, in_size), dtype=np.float32)
    for i in range(out_size):
        start = (i * in_size) // out_size
        end = -(-((i + 1) * in_size) // out_size)  # ceil div
        P[i, start:end] = 1.0 / (end - start)
    return P


def _bilinear_matrix_align_corners(out_size, in_size):
    """U[h, i] = bilinear weight of source i for output h (align_corners=True)."""
    U = np.zeros((out_size, in_size), dtype=np.float32)
    if in_size == 1:
        U[:, 0] = 1.0
        return U
    scale = (in_size - 1) / (out_size - 1)
    for h in range(out_size):
        src = h * scale
        i0 = min(int(np.floor(src)), in_size - 1)
        i1 = min(i0 + 1, in_size - 1)
        frac = src - i0
        U[h, i0] += 1.0 - frac
        U[h, i1] += frac
    return U


# ---------------------------------------------------------------------------
# small helpers
# ---------------------------------------------------------------------------
def _vmem_capacity_bytes():
    try:
        return int(pltpu.get_tpu_info().vmem_capacity_bytes)
    except Exception:
        return 64 << 20          # conservative fallback (v7x per-core VMEM)


def _invariant_spec(block_shape, index_map):
    """Single-buffer a grid-invariant operand when the API supports it."""
    try:
        return pl.BlockSpec(block_shape, index_map, pipeline_mode=pl.Buffered(1))
    except Exception:
        return pl.BlockSpec(block_shape, index_map)


# ---------------------------------------------------------------------------
# Phase A: HW-tiled adaptive avg pooling (all scales) + folded conv/BN/ReLU
# ---------------------------------------------------------------------------
def _ppm_pool_kernel(x_ref, pt_ref, w_ref, b_ref, act_ref, acc_ref):
    t = pl.program_id(1)

    @pl.when(t == 0)
    def _():
        acc_ref[...] = jnp.zeros_like(acc_ref)

    # (C, TILE) @ (TILE, S2p) -> (C, S2p), accumulated over HW tiles
    acc_ref[...] += jnp.dot(x_ref[0], pt_ref[...],
                            preferred_element_type=jnp.float32)

    @pl.when(t == pl.num_programs(1) - 1)
    def _():
        # BN-scale-folded 1x1 conv: (nS*Co, C) @ (C, S2p) -> (nS*Co, S2p)
        conv = jnp.dot(w_ref[...], acc_ref[...],
                       preferred_element_type=jnp.float32)
        # BN shift + block-diagonal scale-selection mask folded into ONE bias.
        # NOTE: the ReLU must stay immediately after this add — it is what
        # zeroes the -1e30 off-block / padded entries.
        act_ref[0] = jnp.maximum(conv + b_ref[...], 0.0)


# ---------------------------------------------------------------------------
# Phase B: per HW tile — identity-channel copy (DMA) + stacked bilinear upsample
# ---------------------------------------------------------------------------
def _ppm_upsample_kernel(x_ref, act_ref, ut_ref, o_ref, copy_sem):
    C = x_ref.shape[1]
    # identity channels via the copy engine, overlapped with the MXU matmul
    cp = pltpu.make_async_copy(x_ref, o_ref.at[:, 0:C, :], copy_sem)
    cp.start()
    up = jnp.dot(act_ref[0], ut_ref[...], preferred_element_type=jnp.float32)
    o_ref[0, C:, :] = up.astype(o_ref.dtype)
    cp.wait()


# ---------------------------------------------------------------------------
# wrapper
# ---------------------------------------------------------------------------
def ppm_forward(x, params, scales=(1, 2, 3, 6)):
    """Full PPM forward. x: (N, C, H, W); params[i] = (W_i (Co,C), bn_scale_i (Co,),
    bn_shift_i (Co,)).  Returns (N, C + len(scales)*Co, H, W)."""
    N, C, H, Wd = x.shape
    HW = H * Wd
    Co = params[0][0].shape[0]
    nS = len(scales)
    nCo = nS * Co
    s2s = [s * s for s in scales]
    S2 = int(sum(s2s))
    assert S2 <= _S2_PAD, "pyramid dim exceeds the 128-lane padding"
    S2p = _S2_PAD
    offs = np.concatenate([[0], np.cumsum(s2s)]).astype(np.int64)
    Ct = C + nCo

    # --- per-generation HW tile (lane) size & padding -----------------------
    vmem_cap = _vmem_capacity_bytes()
    tile_target = 512 if vmem_cap <= (64 << 20) else 1024   # v7x : v5e/v6e
    hw128 = ((HW + 127) // 128) * 128
    TILE = min(tile_target, hw128)
    n_tiles = -(-HW // TILE)
    HWp = n_tiles * TILE

    # --- host-side operator construction -------------------------------------
    Pt = np.zeros((HWp, S2p), np.float32)     # stacked pooling operators (P^T)
    Ut = np.zeros((S2p, HWp), np.float32)     # stacked upsample operators (U^T)
    for i, s in enumerate(scales):
        P = np.kron(_adaptive_pool_matrix(s, H), _adaptive_pool_matrix(s, Wd))
        U = np.kron(_bilinear_matrix_align_corners(H, s),
                    _bilinear_matrix_align_corners(Wd, s))
        Pt[:HW, offs[i]:offs[i + 1]] = P.T
        Ut[offs[i]:offs[i + 1], :HW] = U.T
    # padded Pt cols and Ut rows stay 0 -> padding contributes nothing.

    W_all = np.zeros((nCo, C), np.float32)
    bias2d = np.full((nCo, S2p), _NEG, np.float32)   # padded cols also -1e30
    for i, (w, bn_scale, bn_shift) in enumerate(params):
        w = np.asarray(w, np.float32)
        sc = np.asarray(bn_scale, np.float32).reshape(Co, 1)
        sh = np.asarray(bn_shift, np.float32).reshape(Co, 1)
        W_all[i * Co:(i + 1) * Co, :] = sc * w                    # fold BN scale
        bias2d[i * Co:(i + 1) * Co, offs[i]:offs[i + 1]] = sh     # BN shift + mask

    # operators in bf16 (DEFAULT MXU precision rounds operands to bf16 anyway)
    Pt = jnp.asarray(Pt, jnp.bfloat16)
    Ut = jnp.asarray(Ut, jnp.bfloat16)
    W_all = jnp.asarray(W_all, jnp.bfloat16)
    bias2d = jnp.asarray(bias2d, jnp.float32)

    x_flat = x.reshape(N, C, HW).astype(jnp.float32)
    if HWp != HW:
        x_flat = jnp.pad(x_flat, ((0, 0), (0, 0), (0, HWp - HW)))

    # --- VMEM budget: always set, clamped to 0.9 x physical capacity --------
    f32, bf16 = 4, 2
    phase_a = (2 * C * TILE * f32          # x tile (double-buffered)
               + 2 * TILE * S2p * bf16     # Pt tile
               + 1 * nCo * C * bf16        # folded conv weight (Buffered(1))
               + 1 * nCo * S2p * f32       # 2-D bias / mask   (Buffered(1))
               + 2 * nCo * S2p * f32       # act output block
               + C * S2p * f32)            # pooled accumulator scratch
    phase_b = (2 * C * TILE * f32          # x tile
               + 2 * nCo * S2p * f32       # act block
               + 2 * S2p * TILE * bf16     # Ut tile
               + 2 * Ct * TILE * f32)      # output tile
    vmem_limit = int(min(max(1.3 * max(phase_a, phase_b), 32 << 20),
                         0.9 * vmem_cap))

    # --- phase A: pooled -> conv -> BN -> ReLU (one (nCo, S2p) slab / batch) -
    act = pl.pallas_call(
        _ppm_pool_kernel,
        out_shape=jax.ShapeDtypeStruct((N, nCo, S2p), jnp.float32),
        grid=(N, n_tiles),
        in_specs=[
            pl.BlockSpec((1, C, TILE), lambda n, t: (n, 0, t)),      # x
            pl.BlockSpec((TILE, S2p), lambda n, t: (t, 0)),          # P_all^T tile
            _invariant_spec((nCo, C), lambda n, t: (0, 0)),          # folded conv W
            _invariant_spec((nCo, S2p), lambda n, t: (0, 0)),        # bias / mask
        ],
        out_specs=pl.BlockSpec((1, nCo, S2p), lambda n, t: (n, 0, 0)),
        scratch_shapes=[pltpu.VMEM((C, S2p), jnp.float32)],
        compiler_params=pltpu.CompilerParams(
            dimension_semantics=("parallel", "arbitrary"),
            vmem_limit_bytes=vmem_limit),
    )(x_flat, Pt, W_all, bias2d)

    # --- phase B: identity copy + bilinear upsample, streamed over HW tiles -
    out = pl.pallas_call(
        _ppm_upsample_kernel,
        out_shape=jax.ShapeDtypeStruct((N, Ct, HWp), jnp.float32),
        grid=(N, n_tiles),
        in_specs=[
            pl.BlockSpec((1, C, TILE), lambda n, t: (n, 0, t)),      # x
            pl.BlockSpec((1, nCo, S2p), lambda n, t: (n, 0, 0)),     # act
            pl.BlockSpec((S2p, TILE), lambda n, t: (0, t)),          # U_cat^T tile
        ],
        out_specs=pl.BlockSpec((1, Ct, TILE), lambda n, t: (n, 0, t)),
        scratch_shapes=[pltpu.SemaphoreType.DMA(())],
        compiler_params=pltpu.CompilerParams(
            dimension_semantics=("parallel", "parallel"),
            vmem_limit_bytes=vmem_limit),
    )(x_flat, act, Ut)

    return out[:, :, :HW].reshape(N, Ct, H, Wd)


# ---------------------------------------------------------------------------
# independent numpy reference (direct pooling / gather-based bilinear)
# ---------------------------------------------------------------------------
def _ref_branch(x, s, w, bn_scale, bn_shift):
    xn = np.asarray(x, dtype=np.float64)
    N, C, H, Wd = xn.shape
    pooled = np.zeros((N, C, s, s), np.float64)
    for i in range(s):
        h0, h1 = (i * H) // s, -(-((i + 1) * H) // s)
        for j in range(s):
            w0, w1 = (j * Wd) // s, -(-((j + 1) * Wd) // s)
            pooled[:, :, i, j] = xn[:, :, h0:h1, w0:w1].mean(axis=(2, 3))
    conv = np.einsum('oc,ncij->noij', np.asarray(w, np.float64), pooled)
    act = np.maximum(conv * np.asarray(bn_scale, np.float64).reshape(1, -1, 1, 1)
                     + np.asarray(bn_shift, np.float64).reshape(1, -1, 1, 1), 0.0)
    Co = act.shape[1]
    out = np.zeros((N, Co, H, Wd), np.float64)
    for h in range(H):
        for q in range(Wd):
            if s == 1:
                out[:, :, h, q] = act[:, :, 0, 0]
                continue
            sh = h * (s - 1) / (H - 1)
            sw = q * (s - 1) / (Wd - 1)
            i0 = min(int(np.floor(sh)), s - 1); i1 = min(i0 + 1, s - 1); fh = sh - i0
            j0 = min(int(np.floor(sw)), s - 1); j1 = min(j0 + 1, s - 1); fw = sw - j0
            out[:, :, h, q] = ((1 - fh) * (1 - fw) * act[:, :, i0, j0]
                               + (1 - fh) * fw * act[:, :, i0, j1]
                               + fh * (1 - fw) * act[:, :, i1, j0]
                               + fh * fw * act[:, :, i1, j1])
    return out.astype(np.float32)


if __name__ == "__main__":
    N, C, H, Wd = 2, 8, 16, 16
    Co = C // 4
    scales = (1, 2, 3, 6)
    eps = 1e-5

    key = jax.random.PRNGKey(0)
    keys = jax.random.split(key, 1 + 4 * len(scales))
    x = jax.random.normal(keys[0], (N, C, H, Wd), dtype=jnp.float32)

    params = []
    ki = 1
    for _ in scales:
        w = 0.5 * jax.random.normal(keys[ki], (Co, C), dtype=jnp.float32); ki += 1
        gamma = 1.0 + 0.1 * jax.random.normal(keys[ki], (Co,), dtype=jnp.float32); ki += 1
        beta = 0.1 * jax.random.normal(keys[ki], (Co,), dtype=jnp.float32); ki += 1
        mean = 0.1 * jax.random.normal(keys[ki], (Co,), dtype=jnp.float32); ki += 1
        var = jnp.ones((Co,), dtype=jnp.float32)
        inv = gamma / jnp.sqrt(var + eps)
        bn_scale = inv                      # eval-mode BN folded to scale/shift
        bn_shift = beta - mean * inv
        params.append((w, bn_scale, bn_shift))

    out = jax.block_until_ready(ppm_forward(x, params, scales))
    assert out.shape == (N, C + len(scales) * Co, H, Wd), out.shape

    # verify against an independent numpy (float64) reference
    ref_parts = [np.asarray(x)]
    for s, (w, bs, bb) in zip(scales, params):
        ref_parts.append(_ref_branch(x, s, w, bs, bb))
    ref = np.concatenate(ref_parts, axis=1)
    # DEFAULT MXU precision (bf16 operand rounding, f32 accumulation) ->
    # bf16-level tolerance vs the float64 reference.
    np.testing.assert_allclose(np.asarray(out), ref, rtol=2e-2, atol=2e-2)

    print("KERNEL_OK")
</pallas_src>

<mosaic_0001>
module attributes {stable_mosaic.version = 11 : i64} {
  func.func @_ppm_pool_kernel(%arg0: i32, %arg1: i32, %arg2: memref<1x8x256xf32, #tpu.memory_space<vmem>>, %arg3: memref<256x128xbf16, #tpu.memory_space<vmem>>, %arg4: memref<8x8xbf16, #tpu.memory_space<vmem>>, %arg5: memref<8x128xf32, #tpu.memory_space<vmem>>, %arg6: memref<1x8x128xf32, #tpu.memory_space<vmem>>, %arg7: memref<8x128xf32, #tpu.memory_space<vmem>>) attributes {dimension_semantics = [#tpu.dimension_semantics<parallel>, #tpu.dimension_semantics<arbitrary>], iteration_bounds = array<i64: 2, 1>, scalar_prefetch = 0 : i64, scratch_operands = 1 : i64, tpu.core_type = #tpu.core_type<tc>, window_params = [{transform_indices = @transform_0, window_bounds = array<i64: 1, 8, 256>}, {transform_indices = @transform_1, window_bounds = array<i64: 256, 128>}, {pipeline_mode = #tpu.pipeline_mode<synchronous>, transform_indices = @transform_2, window_bounds = array<i64: 8, 8>}, {pipeline_mode = #tpu.pipeline_mode<synchronous>, transform_indices = @transform_3, window_bounds = array<i64: 8, 128>}, {transform_indices = @transform_4, window_bounds = array<i64: 1, 8, 128>}]} {
    %c0_i32 = arith.constant 0 : i32
    %0 = arith.cmpi eq, %arg1, %c0_i32 : i32
    %1 = arith.extui %0 : i1 to i32
    %c0_i32_0 = arith.constant 0 : i32
    %2 = arith.cmpi ne, %1, %c0_i32_0 : i32
    scf.if %2 {
      %cst_11 = arith.constant 0.000000e+00 : f32
      %13 = vector.broadcast %cst_11 : f32 to vector<8x128xf32>
      %c0_12 = arith.constant 0 : index
      %c0_13 = arith.constant 0 : index
      %14 = vector.load %arg7[%c0_12, %c0_13] : memref<8x128xf32, #tpu.memory_space<vmem>>, vector<8x128xf32>
      tpu.vector_store %arg7[%c0_12, %c0_13], %13 {strides = array<i32>} : memref<8x128xf32, #tpu.memory_space<vmem>>, vector<8x128xf32>,
    } else {
    }
    %c0 = arith.constant 0 : index
    %c0_1 = arith.constant 0 : index
    %3 = vector.load %arg7[%c0, %c0_1] : memref<8x128xf32, #tpu.memory_space<vmem>>, vector<8x128xf32>
    %c0_2 = arith.constant 0 : index
    %c0_3 = arith.constant 0 : index
    %c0_4 = arith.constant 0 : index
    %4 = vector.load %arg2[%c0_2, %c0_3, %c0_4] : memref<1x8x256xf32, #tpu.memory_space<vmem>>, vector<1x8x256xf32>
    %5 = vector.shape_cast %4 : vector<1x8x256xf32> to vector<8x256xf32>
    %c0_5 = arith.constant 0 : index
    %c0_6 = arith.constant 0 : index
    %6 = vector.load %arg3[%c0_5, %c0_6] : memref<256x128xbf16, #tpu.memory_space<vmem>>, vector<256x128xbf16>
    %cst = arith.constant dense<0.000000e+00> : vector<8x128xf32>
    %7 = tpu.matmul %5, %6, %cst {dimension_numbers = #tpu.dot_dimension_numbers<[1], [0], [0], [1], [0, 0, 1, 1], [], []>} : vector<8x256xf32>, vector<256x128xbf16>, vector<8x128xf32> -> vector<8x128xf32>
    %8 = arith.addf %3, %7 : vector<8x128xf32>
    %c0_7 = arith.constant 0 : index
    %c0_8 = arith.constant 0 : index
    %9 = vector.load %arg7[%c0_7, %c0_8] : memref<8x128xf32, #tpu.memory_space<vmem>>, vector<8x128xf32>
    tpu.vector_store %arg7[%c0_7, %c0_8], %8 {strides = array<i32>} : memref<8x128xf32, #tpu.memory_space<vmem>>, vector<8x128xf32>,
    %c0_i32_9 = arith.constant 0 : i32
    %10 = arith.cmpi eq, %arg1, %c0_i32_9 : i32
    %11 = arith.extui %10 : i1 to i32
    %c0_i32_10 = arith.constant 0 : i32
    %12 = arith.cmpi ne, %11, %c0_i32_10 : i32
    scf.if %12 {
      %c0_11 = arith.constant 0 : index
      %c0_12 = arith.constant 0 : index
      %13 = vector.load %arg4[%c0_11, %c0_12] : memref<8x8xbf16, #tpu.memory_space<vmem>>, vector<8x8xbf16>
      %c0_13 = arith.constant 0 : index
      %c0_14 = arith.constant 0 : index
      %14 = vector.load %arg7[%c0_13, %c0_14] : memref<8x128xf32, #tpu.memory_space<vmem>>, vector<8x128xf32>
      %cst_15 = arith.constant dense<0.000000e+00> : vector<8x128xf32>
      %15 = tpu.matmul %13, %14, %cst_15 {dimension_numbers = #tpu.dot_dimension_numbers<[1], [0], [0], [1], [0, 0, 1, 1], [], []>} : vector<8x8xbf16>, vector<8x128xf32>, vector<8x128xf32> -> vector<8x128xf32>
      %c0_16 = arith.constant 0 : index
      %c0_17 = arith.constant 0 : index
      %16 = vector.load %arg5[%c0_16, %c0_17] : memref<8x128xf32, #tpu.memory_space<vmem>>, vector<8x128xf32>
      %17 = arith.addf %15, %16 : vector<8x128xf32>
      %cst_18 = arith.constant 0.000000e+00 : f32
      %18 = vector.broadcast %cst_18 : f32 to vector<8x128xf32>
      %19 = arith.maximumf %17, %18 : vector<8x128xf32>
      %c0_19 = arith.constant 0 : index
      %c0_20 = arith.constant 0 : index
      %c0_21 = arith.constant 0 : index
      %20 = vector.load %arg6[%c0_19, %c0_20, %c0_21] : memref<1x8x128xf32, #tpu.memory_space<vmem>>, vector<1x8x128xf32>
      %21 = vector.shape_cast %20 : vector<1x8x128xf32> to vector<8x128xf32>
      %22 = vector.shape_cast %19 : vector<8x128xf32> to vector<1x8x128xf32>
      tpu.vector_store %arg6[%c0_19, %c0_20, %c0_21], %22 {strides = array<i32>} : memref<1x8x128xf32, #tpu.memory_space<vmem>>, vector<1x8x128xf32>,
    } else {
    }
    return
  }
  func.func @transform_0(%arg0: i32, %arg1: i32) -> (i32, i32, i32) {
    %c0_i32 = arith.constant 0 : i32
    %c0_i32_0 = arith.constant 0 : i32
    return %arg0, %c0_i32, %arg1 : i32, i32, i32
  }
  func.func @transform_1(%arg0: i32, %arg1: i32) -> (i32, i32) {
    %c0_i32 = arith.constant 0 : i32
    %c0_i32_0 = arith.constant 0 : i32
    return %arg1, %c0_i32 : i32, i32
  }
  func.func @transform_2(%arg0: i32, %arg1: i32) -> (i32, i32) {
    %c0_i32 = arith.constant 0 : i32
    %c0_i32_0 = arith.constant 0 : i32
    %c0_i32_1 = arith.constant 0 : i32
    return %c0_i32, %c0_i32_0 : i32, i32
  }
  func.func @transform_3(%arg0: i32, %arg1: i32) -> (i32, i32) {
    %c0_i32 = arith.constant 0 : i32
    %c0_i32_0 = arith.constant 0 : i32
    %c0_i32_1 = arith.constant 0 : i32
    return %c0_i32, %c0_i32_0 : i32, i32
  }
  func.func @transform_4(%arg0: i32, %arg1: i32) -> (i32, i32, i32) {
    %c0_i32 = arith.constant 0 : i32
    %c0_i32_0 = arith.constant 0 : i32
    %c0_i32_1 = arith.constant 0 : i32
    return %arg0, %c0_i32, %c0_i32_0 : i32, i32, i32
  }
}

</mosaic_0001>

<llo_original>
// kernel: tpu_custom_call.1
$region0: #{tpu_custom_call.1}
  #allocation0 [shape = 'u32[]', space=smem, size = 0x4, offset = 0x4, fixed_abs, tag = 'smem constant byte address 0x4 - core index']
  #allocation1 [shape = 'u32[144,128]{1,0:T(1,128)}', space=vmem, size = 0x12000, scoped, tag = 'internal scratch']
  #allocation2 [shape = 'f32[8,128]{1,0:T(8,128)}', space=vmem, size = 0x1000, scoped, tag = 'scratch operand']
  %s0 = inlined_call_operand.hbm [shape: f32[2,8,256], index: 0, kind: input, shape index: {}]
  %s1 = inlined_call_operand.hbm [shape: bf16[256,128], index: 1, kind: input, shape index: {}]
  %s2 = inlined_call_operand.hbm [shape: bf16[8,8], index: 2, kind: input, shape index: {}]
  %s3 = inlined_call_operand.hbm [shape: f32[8,128], index: 3, kind: input, shape index: {}]
  %s4 = inlined_call_operand.hbm [shape: f32[2,8,128], index: 4, kind: output, shape index: {}]
  %s5 = sld [smem:[#allocation0]]
  $region73: #{tpu_custom_call.1} parent=0
    _
  %s7 = ssub.s32 1, %s5
  %s8 = scalar_select 0, %s7, %s5
  $region1: #{tpu_custom_call.1} parent=0
    #allocation3 [shape = 'u8[16384]{0}', space=vmem, size = 0x4000, scoped, tag = 'input window, operand 0']
    #allocation4 [shape = 's32[2]{0}', space=sflag, size = 0x8, scoped, tag = 'scoped memory for tpu_custom_call.1']
    #allocation5 [shape = 's32[2]{0}', space=sflag, size = 0x8, scoped, tag = 'scoped memory for tpu_custom_call.1']
    #allocation6 [shape = 'u8[65536]{0}', space=vmem, size = 0x10000, scoped, tag = 'input window, operand 1, single buffered']
    #allocation7 [shape = 's32[1]{0}', space=sflag, size = 0x4, scoped, tag = 'scoped memory for tpu_custom_call.1']
    #allocation8 [shape = 'u8[2048]{0}', space=vmem, size = 0x800, scoped, tag = 'input window, operand 2, single buffered']
    #allocation9 [shape = 'u8[4096]{0}', space=vmem, size = 0x1000, scoped, tag = 'input window, operand 3, single buffered']
    #allocation10 [shape = 's32[1]{0}', space=sflag, size = 0x4, scoped, tag = 'scoped memory for tpu_custom_call.1']
    #allocation11 [shape = 'u8[8192]{0}', space=vmem, size = 0x2000, scoped, tag = 'output window, operand 0']
    %9 = vsyncpa [#allocation4], 0
    %s10 = scalar_lea.sflag [#allocation4], 1
    %11 = vsyncpa %s10, 0
    %12 = vsyncpa [#allocation7], 0
    %13 = vsyncpa [#allocation10], 0
    %14 = vsyncpa [#allocation5], 0
    %s15 = scalar_lea.sflag [#allocation5], 1
    %16 = vsyncpa %s15, 0
    loop: start=0, step=1, limit=4
    $region2: #{tpu_custom_call.1} parent=1 // loop_pre_header
      _
    $region3: #{tpu_custom_call.1} parent=1 // loop_header
      %s18 = sphi 0, %s22
      %p19 = scmp.ge.s32.totalorder %s18, 4
      %s25 = sphi 0, %s37
      %s26 = sphi 0, %s33
      %s27 = sphi 0, %s25
      %s28 = sphi 0, %s26
      %s29 = sphi 0, %s27
      %s30 = sphi 0, %s28
      %s42 = sphi 0, %s44
      %s45 = sphi 0, %s42
      %s46 = sphi 0, %s45
      %s62 = sphi 0, %s46
      %s68 = sphi 0, %s70
      %s71 = sphi 0, %s68
      %s72 = sphi 0, %s71
      %s88 = sphi 0, %s72
      %s92 = sphi 0, %s92
      %s94 = sphi 0, %s92
      %s95 = sphi 0, %s94
      %s109 = sphi 0, %s95
      %s113 = sphi 0, %s113
      %s115 = sphi 0, %s113
      %s116 = sphi 0, %s115
      %s130 = sphi 0, %s116
      %s136 = sphi 0, %s138
      %s139 = sphi 0, %s136
      %s140 = sphi 0, %s139
      %s156 = sphi 0, %s140
    $region4: #{tpu_custom_call.1} parent=1 // loop_header_branch
      %21 = sbr.rel (%p19) target = $region8
    $region5: #{tpu_custom_call.1} parent=1 // loop_body
      %s23 = ssub.s32 %s18, 1
      %s24 = ssub.s32 %s18, 2
      %s31 = sadd.s32 1, %s26
      %p32 = scmp.ge.s32.totalorder %s31, 1
      %s33 = scalar_select %p32, 0, %s31
      %s34 = sadd.s32 1, %s25
      %s35 = scalar_select %p32, %s34, %s25
      %p36 = scmp.ge.s32.totalorder %s35, 2
      %s37 = scalar_select %p36, 0, %s35
      %s38 = ssub.s32 %s25, %s37
      %s39 = ssub.s32 %s26, %s33
      %s40 = sor.u32 %s38, %s39
      %p41 = scmp.eq.s32.totalorder %s40, 0
      %s43 = sadd.s32 %s42, 1
      %s44 = scalar_select %p41, %s42, %s43
      %p47 = pneg %p41
      %p48 = scmp.eq.s32.totalorder %s18, 1
      %p49 = por %p47, %p48
      %p50 = scmp.ne.s32.totalorder %s42, %s45
      %p51 = scmp.eq.s32.totalorder %s18, 0
      %p52 = por %p50, %p51
      %p53 = scmp.ne.s32.totalorder %s42, %s45
      %p54 = scmp.eq.s32.totalorder %s23, 1
      %p55 = por %p53, %p54
      %p56 = scmp.ne.s32.totalorder %s45, %s46
      %p57 = scmp.eq.s32.totalorder %s23, 0
      %p58 = por %p56, %p57
      %p59 = scmp.ne.s32.totalorder %s45, %s46
      %p60 = scmp.eq.s32.totalorder %s24, 1
      %p61 = por %p59, %p60
      %p63 = scmp.ne.s32.totalorder %s46, %s62
      %p64 = scmp.eq.s32.totalorder %s24, 0
      %p65 = por %p63, %p64
      %s66 = ssub.s32 %s26, %s33
      %p67 = scmp.eq.s32.totalorder %s66, 0
      %s69 = sadd.s32 %s68, 1
      %s70 = scalar_select %p67, %s68, %s69
      %p73 = pneg %p67
      %p74 = scmp.eq.s32.totalorder %s18, 1
      %p75 = por %p73, %p74
      %p76 = scmp.ne.s32.totalorder %s68, %s71
      %p77 = scmp.eq.s32.totalorder %s18, 0
      %p78 = por %p76, %p77
      %p79 = scmp.ne.s32.totalorder %s68, %s71
      %p80 = scmp.eq.s32.totalorder %s23, 1
      %p81 = por %p79, %p80
      %p82 = scmp.ne.s32.totalorder %s71, %s72
      %p83 = scmp.eq.s32.totalorder %s23, 0
      %p84 = por %p82, %p83
      %p85 = scmp.ne.s32.totalorder %s71, %s72
      %p86 = scmp.eq.s32.totalorder %s24, 1
      %p87 = por %p85, %p86
      %p89 = scmp.ne.s32.totalorder %s72, %s88
      %p90 = scmp.eq.s32.totalorder %s24, 0
      %p91 = por %p89, %p90
      %s93 = sadd.s32 %s92, 1
      %p96 = scmp.eq.s32.totalorder %s18, 1
      %p97 = scmp.ne.s32.totalorder %s92, %s94
      %p98 = scmp.eq.s32.totalorder %s18, 0
      %p99 = por %p97, %p98
      %p100 = scmp.ne.s32.totalorder %s92, %s94
      %p101 = scmp.eq.s32.totalorder %s23, 1
      %p102 = por %p100, %p101
      %p103 = scmp.ne.s32.totalorder %s94, %s95
      %p104 = scmp.eq.s32.totalorder %s23, 0
      %p105 = por %p103, %p104
      %p106 = scmp.ne.s32.totalorder %s94, %s95
      %p107 = scmp.eq.s32.totalorder %s24, 1
      %p108 = por %p106, %p107
      %p110 = scmp.ne.s32.totalorder %s95, %s109
      %p111 = scmp.eq.s32.totalorder %s24, 0
      %p112 = por %p110, %p111
      %s114 = sadd.s32 %s113, 1
      %p117 = scmp.eq.s32.totalorder %s18, 1
      %p118 = scmp.ne.s32.totalorder %s113, %s115
      %p119 = scmp.eq.s32.totalorder %s18, 0
      %p120 = por %p118, %p119
      %p121 = scmp.ne.s32.totalorder %s113, %s115
      %p122 = scmp.eq.s32.totalorder %s23, 1
      %p123 = por %p121, %p122
      %p124 = scmp.ne.s32.totalorder %s115, %s116
      %p125 = scmp.eq.s32.totalorder %s23, 0
      %p126 = por %p124, %p125
      %p127 = scmp.ne.s32.totalorder %s115, %s116
      %p128 = scmp.eq.s32.totalorder %s24, 1
      %p129 = por %p127, %p128
      %p131 = scmp.ne.s32.totalorder %s116, %s130
      %p132 = scmp.eq.s32.totalorder %s24, 0
      %p133 = por %p131, %p132
      %s134 = ssub.s32 %s25, %s37
      %p135 = scmp.eq.s32.totalorder %s134, 0
      %s137 = sadd.s32 %s136, 1
      %s138 = scalar_select %p135, %s136, %s137
      %p141 = pneg %p135
      %p142 = scmp.eq.s32.totalorder %s18, 1
      %p143 = por %p141, %p142
      %p144 = scmp.ne.s32.totalorder %s136, %s139
      %p145 = scmp.eq.s32.totalorder %s18, 0
      %p146 = por %p144, %p145
      %p147 = scmp.ne.s32.totalorder %s136, %s139
      %p148 = scmp.eq.s32.totalorder %s23, 1
      %p149 = por %p147, %p148
      %p150 = scmp.ne.s32.totalorder %s139, %s140
      %p151 = scmp.eq.s32.totalorder %s23, 0
      %p152 = por %p150, %p151
      %p153 = scmp.ne.s32.totalorder %s139, %s140
      %p154 = scmp.eq.s32.totalorder %s24, 1
      %p155 = por %p153, %p154
      %p157 = scmp.ne.s32.totalorder %s140, %s156
      %p158 = scmp.eq.s32.totalorder %s24, 0
      %p159 = por %p157, %p158
      %p160 = scmp.le.s32.totalorder 1, %s18
      %p161 = scmp.lt.s32.totalorder %s18, 3
      %p162 = pnand %p160, %p161
      %p163 = pneg %p162
      // Predicated region
      $region9: #{tpu_custom_call.1} parent=5 // pred_check
        _
      $region10: #{tpu_custom_call.1} parent=5 // pred_check_branch
        %165 = sbr.rel (%p162) target = $region12
      $region11: #{tpu_custom_call.1} parent=5 // pred_region
        %s166 = ssub.s32 %s18, 1
        // Predicated region
        $region13: #{tpu_custom_call.1} parent=11 // pred_check
          %p167 = pneg %p84
        $region14: #{tpu_custom_call.1} parent=11 // pred_check_branch
          %169 = sbr.rel (%p167) target = $region16
        $region15: #{tpu_custom_call.1} parent=11 // pred_region
          %s170 = smul.u32 32, %s28
          %s172 = ssub.s32 2048, 2048
          %173 = vsyncadd [#allocation7], %s172
          %s174 = smul.addr %s170, 64
          %s175 = scalar_lea.hbm %s1, %s174
          %s176 = sshll.u32 [#allocation6], 4
          %s177 = int_to_ptr.vmem [resolvable:$true] %s176
          %182 = dma.hbm_to_vmem [thread:$0]  %s175, 2048, %s177, [#allocation7], 64, 64, 4
        $region16: #{tpu_custom_call.1} parent=11 // pred_fallthru
          _
        // Predicated region
        $region17: #{tpu_custom_call.1} parent=11 // pred_check
          %p183 = pneg %p105
        $region18: #{tpu_custom_call.1} parent=11 // pred_check_branch
          %185 = sbr.rel (%p183) target = $region20
        $region19: #{tpu_custom_call.1} parent=11 // pred_region
          %s187 = ssub.s32 64, 64
          %188 = vsyncadd [#allocation7], %s187
          %s190 = sshll.u32 [#allocation8], 4
          %s191 = int_to_ptr.vmem [resolvable:$true] %s190
          %193 = dma.hbm_to_vmem [thread:$0]  %s2, 64, %s191, [#allocation7]
        $region20: #{tpu_custom_call.1} parent=11 // pred_fallthru
          _
        // Predicated region
        $region21: #{tpu_custom_call.1} parent=11 // pred_check
          %p194 = pneg %p126
        $region22: #{tpu_custom_call.1} parent=11 // pred_check_branch
          %196 = sbr.rel (%p194) target = $region24
        $region23: #{tpu_custom_call.1} parent=11 // pred_region
          %s198 = ssub.s32 128, 128
          %199 = vsyncadd [#allocation10], %s198
          %s201 = sshll.u32 [#allocation9], 4
          %s202 = int_to_ptr.vmem [resolvable:$true] %s201
          %204 = dma.hbm_to_vmem [thread:$0]  %s3, 128, %s202, [#allocation10]
        $region24: #{tpu_custom_call.1} parent=11 // pred_fallthru
          _
      $region12: #{tpu_custom_call.1} parent=5 // pred_fallthru
        _
      %p205 = scmp.lt.s32.totalorder %s18, 2
      // Predicated region
      $region25: #{tpu_custom_call.1} parent=5 // pred_check
        %p206 = pneg %p205
      $region26: #{tpu_custom_call.1} parent=5 // pred_check_branch
        %208 = sbr.rel (%p206) target = $region28
      $region27: #{tpu_custom_call.1} parent=5 // pred_region
        // Predicated region
        $region29: #{tpu_custom_call.1} parent=27 // pred_check
          %p209 = pneg %p52
        $region30: #{tpu_custom_call.1} parent=27 // pred_check_branch
          %211 = sbr.rel (%p209) target = $region32
        $region31: #{tpu_custom_call.1} parent=27 // pred_region
          %s212 = sand.u32 %s42, 1
          %s213 = scalar_lea.sflag [#allocation4], %s212
          %s214 = sand.u32 %s42, 1
          %s215 = smul.addr %s214, 16
          %s216 = scalar_lea.vmem [#allocation3], %s215
          %s217 = smul.u32 2, %s26
          %s219 = ssub.s32 256, 256
          %220 = vsyncadd %s213, %s219
          %s221 = smul.addr %s25, 2
          %s222 = sadd.s32 %s217, %s221
          %s223 = smul.addr %s222, 128
          %s224 = scalar_lea.hbm %s0, %s223
          %s226 = sshll.u32 %s216, 4
          %s227 = int_to_ptr.vmem [resolvable:$true] %s226
          %229 = dma.hbm_to_vmem [thread:$0]  %s224, 256, %s227, %s213
        $region32: #{tpu_custom_call.1} parent=27 // pred_fallthru
          _
      $region28: #{tpu_custom_call.1} parent=5 // pred_fallthru
        _
      %p230 = scmp.le.s32.totalorder 1, %s18
      %p231 = scmp.lt.s32.totalorder %s18, 3
      %p232 = pnand %p230, %p231
      %p233 = pneg %p232
      // Predicated region
      $region33: #{tpu_custom_call.1} parent=5 // pred_check
        _
      $region34: #{tpu_custom_call.1} parent=5 // pred_check_branch
        %235 = sbr.rel (%p232) target = $region36
      $region35: #{tpu_custom_call.1} parent=5 // pred_region
        %s236 = ssub.s32 %s18, 1
        %s237 = sand.u32 %s45, 1
        %s238 = scalar_lea.sflag [#allocation4], %s237
        %s239 = sand.u32 %s45, 1
        %s240 = smul.addr %s239, 16
        %s241 = scalar_lea.vmem [#allocation3], %s240
        // Predicated region
        $region37: #{tpu_custom_call.1} parent=35 // pred_check
          %p242 = pneg %p58
        $region38: #{tpu_custom_call.1} parent=35 // pred_check_branch
          %244 = sbr.rel (%p242) target = $region40
        $region39: #{tpu_custom_call.1} parent=35 // pred_region
          %245 = dma.done %s238, 256
        $region40: #{tpu_custom_call.1} parent=35 // pred_fallthru
          _
        // Predicated region
        $region41: #{tpu_custom_call.1} parent=35 // pred_check
          %p246 = pneg %p84
        $region42: #{tpu_custom_call.1} parent=35 // pred_check_branch
          %248 = sbr.rel (%p246) target = $region44
        $region43: #{tpu_custom_call.1} parent=35 // pred_region
          %249 = dma.done [#allocation7], 2048
        $region44: #{tpu_custom_call.1} parent=35 // pred_fallthru
          _
        // Predicated region
        $region45: #{tpu_custom_call.1} parent=35 // pred_check
          %p250 = pneg %p105
        $region46: #{tpu_custom_call.1} parent=35 // pred_check_branch
          %252 = sbr.rel (%p250) target = $region48
        $region47: #{tpu_custom_call.1} parent=35 // pred_region
          %253 = dma.done [#allocation7], 64
        $region48: #{tpu_custom_call.1} parent=35 // pred_fallthru
          _
        // Predicated region
        $region49: #{tpu_custom_call.1} parent=35 // pred_check
          %p254 = pneg %p126
        $region50: #{tpu_custom_call.1} parent=35 // pred_check_branch
          %256 = sbr.rel (%p254) target = $region52
        $region51: #{tpu_custom_call.1} parent=35 // pred_region
          %257 = dma.done [#allocation10], 128
        $region52: #{tpu_custom_call.1} parent=35 // pred_fallthru
          _
        %s258 = sand.u32 %s45, 1
        %s259 = scalar_lea.sflag [#allocation4], %s258
        %s260 = sand.u32 %s45, 1
        %s261 = smul.addr %s260, 16
        %s262 = scalar_lea.vmem [#allocation3], %s261
        %p263 = pneg %p58
        %p264 = pneg %p55
        %p265 = pneg %p84
        %p266 = pneg %p81
        %p267 = pneg %p105
        %p268 = pneg %p102
        %p269 = pneg %p126
        %p270 = pneg %p123
        %p271 = pneg %p152
        %p272 = pneg %p149
        %s273 = sand.u32 %s139, 1
        %s274 = scalar_lea.sflag [#allocation5], %s273
        %s275 = sand.u32 %s139, 1
        %s276 = smul.addr %s275, 8
        %s277 = scalar_lea.vmem [#allocation11], %s276
        %s278 = smul.u32 2, %s28
        %s279 = smul.u32 32, %s28
        %p281 = scmp.eq.s32.totalorder %s28, 0
        // Predicated region
        $region53: #{tpu_custom_call.1} parent=35 // pred_check
          %p282 = pneg %p281
        $region54: #{tpu_custom_call.1} parent=35 // pred_check_branch
          %284 = sbr.rel (%p282) target = $region56
        $region55: #{tpu_custom_call.1} parent=35 // pred_region
          %285 = vst [vmem:[#allocation2] sm:$0xff] 0.0
        $region56: #{tpu_custom_call.1} parent=35 // pred_fallthru
          _
        %v286 = vld [vmem:[#allocation2] sm:$0xff]
        %v287 = vld [vmem:[%s241] sm:$0xff]
        %v288 = vld [vmem:[%s241 + $0x8] sm:$0xff]
        %v289 = vld [vmem:[#allocation6] sm:$0xf]
        %v290 = vld [vmem:[#allocation6 + $0x4] sm:$0xf]
        %v291 = vld [vmem:[#allocation6 + $0x8] sm:$0xf]
        %v292 = vld [vmem:[#allocation6 + $0xc] sm:$0xf]
        %v293 = vld [vmem:[#allocation6 + $0x10] sm:$0xf]
        %v294 = vld [vmem:[#allocation6 + $0x14] sm:$0xf]
        %v295 = vld [vmem:[#allocation6 + $0x18] sm:$0xf]
        %v296 = vld [vmem:[#allocation6 + $0x1c] sm:$0xf]
        %v297 = vld [vmem:[#allocation6 + $0x20] sm:$0xf]
        %v298 = vld [vmem:[#allocation6 + $0x24] sm:$0xf]
        %v299 = vld [vmem:[#allocation6 + $0x28] sm:$0xf]
        %v300 = vld [vmem:[#allocation6 + $0x2c] sm:$0xf]
        %v301 = vld [vmem:[#allocation6 + $0x30] sm:$0xf]
        %v302 = vld [vmem:[#allocation6 + $0x34] sm:$0xf]
        %v303 = vld [vmem:[#allocation6 + $0x38] sm:$0xf]
        %v304 = vld [vmem:[#allocation6 + $0x3c] sm:$0xf]
        %v305 = vld [vmem:[#allocation6 + $0x40] sm:$0xf]
        %v306 = vld [vmem:[#allocation6 + $0x44] sm:$0xf]
        %v307 = vld [vmem:[#allocation6 + $0x48] sm:$0xf]
        %v308 = vld [vmem:[#allocation6 + $0x4c] sm:$0xf]
        %v309 = vld [vmem:[#allocation6 + $0x50] sm:$0xf]
        %v310 = vld [vmem:[#allocation6 + $0x54] sm:$0xf]
        %v311 = vld [vmem:[#allocation6 + $0x58] sm:$0xf]
        %v312 = vld [vmem:[#allocation6 + $0x5c] sm:$0xf]
        %v313 = vld [vmem:[#allocation6 + $0x60] sm:$0xf]
        %v314 = vld [vmem:[#allocation6 + $0x64] sm:$0xf]
        %v315 = vld [vmem:[#allocation6 + $0x68] sm:$0xf]
        %v316 = vld [vmem:[#allocation6 + $0x6c] sm:$0xf]
        %v317 = vld [vmem:[#allocation6 + $0x70] sm:$0xf]
        %v318 = vld [vmem:[#allocation6 + $0x74] sm:$0xf]
        %v319 = vld [vmem:[#allocation6 + $0x78] sm:$0xf]
        %v320 = vld [vmem:[#allocation6 + $0x7c] sm:$0xf]
        %v353 = vunpack.c.l.b16 %v289
        %v354 = vunpack.c.l.b16 %v290
        %v355 = vunpack.c.l.b16 %v291
        %v356 = vunpack.c.l.b16 %v292
        %v357 = vunpack.c.l.b16 %v293
        %v358 = vunpack.c.l.b16 %v294
        %v359 = vunpack.c.l.b16 %v295
        %v360 = vunpack.c.l.b16 %v296
        %v361 = vunpack.c.l.b16 %v297
        %v362 = vunpack.c.l.b16 %v298
        %v363 = vunpack.c.l.b16 %v299
        %v364 = vunpack.c.l.b16 %v300
        %v365 = vunpack.c.l.b16 %v301
        %v366 = vunpack.c.l.b16 %v302
        %v367 = vunpack.c.l.b16 %v303
        %v368 = vunpack.c.l.b16 %v304
        %v369 = vunpack.c.l.b16 %v305
        %v370 = vunpack.c.l.b16 %v306
        %v371 = vunpack.c.l.b16 %v307
        %v372 = vunpack.c.l.b16 %v308
        %v373 = vunpack.c.l.b16 %v309
        %v374 = vunpack.c.l.b16 %v310
        %v375 = vunpack.c.l.b16 %v311
        %v376 = vunpack.c.l.b16 %v312
        %v377 = vunpack.c.l.b16 %v313
        %v378 = vunpack.c.l.b16 %v314
        %v379 = vunpack.c.l.b16 %v315
        %v380 = vunpack.c.l.b16 %v316
        %v381 = vunpack.c.l.b16 %v317
        %v382 = vunpack.c.l.b16 %v318
        %v383 = vunpack.c.l.b16 %v319
        %v384 = vunpack.c.l.b16 %v320
        %v385 = vpack.c.b16 %v354, %v353
        %v386 = vpack.c.b16 %v356, %v355
        %v387 = vpack.c.b16 %v358, %v357
        %v388 = vpack.c.b16 %v360, %v359
        %v389 = vpack.c.b16 %v362, %v361
        %v390 = vpack.c.b16 %v364, %v363
        %v391 = vpack.c.b16 %v366, %v365
        %v392 = vpack.c.b16 %v368, %v367
        %v393 = vpack.c.b16 %v370, %v369
        %v394 = vpack.c.b16 %v372, %v371
        %v395 = vpack.c.b16 %v374, %v373
        %v396 = vpack.c.b16 %v376, %v375
        %v397 = vpack.c.b16 %v378, %v377
        %v398 = vpack.c.b16 %v380, %v379
        %v399 = vpack.c.b16 %v382, %v381
        %v400 = vpack.c.b16 %v384, %v383
        %417 = vmatprep.subr.bf16.mxu0 0
        %418 = vmatpush1.bf16.msra.mxu0 %v392
        %419 = vmatprep.subr.bf16.mxu0 0
        %420 = vmatpush1.bf16.msra.mxu0 %v391
        %421 = vmatprep.subr.bf16.mxu0 0
        %422 = vmatpush1.bf16.msra.mxu0 %v390
        %423 = vmatprep.subr.bf16.mxu0 0
        %424 = vmatpush1.bf16.msra.mxu0 %v389
        %425 = vmatprep.subr.bf16.mxu0 0
        %426 = vmatpush1.bf16.msra.mxu0 %v388
        %427 = vmatprep.subr.bf16.mxu0 0
        %428 = vmatpush1.bf16.msra.mxu0 %v387
        %429 = vmatprep.subr.bf16.mxu0 0
        %430 = vmatpush1.bf16.msra.mxu0 %v386
        %431 = vmatprep.subr.bf16.mxu0 0
        %432 = vmatpush1.bf16.msra.mxu0 %v385
        %433 = vmatprep.subr.bf16.mxu0 0
        %434 = vmatpush2.bf16.msra.mxu0 %v400
        %435 = vmatprep.subr.bf16.mxu0 0
        %436 = vmatpush2.bf16.msra.mxu0 %v399
        %437 = vmatprep.subr.bf16.mxu0 0
        %438 = vmatpush2.bf16.msra.mxu0 %v398
        %439 = vmatprep.subr.bf16.mxu0 0
        %440 = vmatpush2.bf16.msra.mxu0 %v397
        %441 = vmatprep.subr.bf16.mxu0 0
        %442 = vmatpush2.bf16.msra.mxu0 %v396
        %443 = vmatprep.subr.bf16.mxu0 0
        %444 = vmatpush2.bf16.msra.mxu0 %v395
        %445 = vmatprep.subr.bf16.mxu0 0
        %446 = vmatpush2.bf16.msra.mxu0 %v394
        %447 = vmatprep.subr.bf16.mxu0 0
        %448 = vmatpush2.bf16.msra.mxu0 %v393
        %449 = vmatprep.mubr.f32.mxu0 %v288
        %450 = vmatmul.mubr.f32.gmra.mxu0 %v287
        %v451 = vpop.f32.mrf.mxu0
        %v452 = vadd.f32 0.0, %v451
        %v453 = vpop.f32.mrf.mxu0
        %454 = vdwg.mxu0
        %v455 = vadd.f32 %v286, %v452
        %456 = vst [vmem:[#allocation2] sm:$0xff] %v455
        // Predicated region
        $region57: #{tpu_custom_call.1} parent=35 // pred_check
          %p457 = pneg %p281
        $region58: #{tpu_custom_call.1} parent=35 // pred_check_branch
          %459 = sbr.rel (%p457) target = $region60
        $region59: #{tpu_custom_call.1} parent=35 // pred_region
          %v460 = vld [vmem:[#allocation8] sm:$0xf]
          %v461 = vld [vmem:[#allocation2] sm:$0xff]
          %v462 = vld [vmem:[#allocation9] sm:$0xff]
          %vm463 = vcmask 64512
          %v465 = vsel %vm463, %v460, 0
          %467 = vmatprep.subr.mxu0 0.0
          %468 = vmatpush1.msra.mxu0 0.0
          %469 = vmatprep.subr.mxu0 0.0
          %470 = vmatpush1.msra.mxu0 0.0
          %471 = vmatprep.subr.mxu0 0.0
          %472 = vmatpush1.msra.mxu0 0.0
          %473 = vmatprep.subr.mxu0 0.0
          %474 = vmatpush1.msra.mxu0 0.0
          %475 = vmatprep.subr.mxu0 0.0
          %476 = vmatpush1.msra.mxu0 0.0
          %477 = vmatprep.subr.mxu0 0.0
          %478 = vmatpush1.msra.mxu0 0.0
          %479 = vmatprep.subr.mxu0 0.0
          %480 = vmatpush1.msra.mxu0 0.0
          %481 = vmatprep.subr.mxu0 0.0
          %482 = vmatpush1.msra.mxu0 0.0
          %483 = vmatprep.subr.mxu0 0.0
          %484 = vmatpush1.msra.mxu0 0.0
          %485 = vmatprep.subr.mxu0 0.0
          %486 = vmatpush1.msra.mxu0 0.0
          %487 = vmatprep.subr.mxu0 0.0
          %488 = vmatpush1.msra.mxu0 0.0
          %489 = vmatprep.subr.mxu0 0.0
          %490 = vmatpush1.msra.mxu0 0.0
          %491 = vmatprep.subr.mxu0 0.0
          %492 = vmatpush1.msra.mxu0 0.0
          %493 = vmatprep.subr.mxu0 0.0
          %494 = vmatpush1.msra.mxu0 0.0
          %495 = vmatprep.subr.mxu0 0.0
          %496 = vmatpush1.msra.mxu0 0.0
          %497 = vmatprep.subr.mxu0 0.0
          %498 = vmatpush1.msra.mxu0 %v461
          %499 = vmatprep.subr.mxu0 0.0
          %500 = vmatpush2.msra.mxu0 0.0
          %501 = vmatprep.subr.mxu0 0.0
          %502 = vmatpush2.msra.mxu0 0.0
          %503 = vmatprep.subr.mxu0 0.0
          %504 = vmatpush2.msra.mxu0 0.0
          %505 = vmatprep.subr.mxu0 0.0
          %506 = vmatpush2.msra.mxu0 0.0
          %507 = vmatprep.subr.mxu0 0.0
          %508 = vmatpush2.msra.mxu0 0.0
          %509 = vmatprep.subr.mxu0 0.0
          %510 = vmatpush2.msra.mxu0 0.0
          %511 = vmatprep.subr.mxu0 0.0
          %512 = vmatpush2.msra.mxu0 0.0
          %513 = vmatprep.subr.mxu0 0.0
          %514 = vmatpush2.msra.mxu0 0.0
          %515 = vmatprep.subr.mxu0 0.0
          %516 = vmatpush2.msra.mxu0 0.0
          %517 = vmatprep.subr.mxu0 0.0
          %518 = vmatpush2.msra.mxu0 0.0
          %519 = vmatprep.subr.mxu0 0.0
          %520 = vmatpush2.msra.mxu0 0.0
          %521 = vmatprep.subr.mxu0 0.0
          %522 = vmatpush2.msra.mxu0 0.0
          %523 = vmatprep.subr.mxu0 0.0
          %524 = vmatpush2.msra.mxu0 0.0
          %525 = vmatprep.subr.mxu0 0.0
          %526 = vmatpush2.msra.mxu0 0.0
          %527 = vmatprep.subr.mxu0 0.0
          %528 = vmatpush2.msra.mxu0 0.0
          %529 = vmatprep.subr.mxu0 0.0
          %530 = vmatpush2.msra.mxu0 0.0
          %531 = vmatprep.mubr.bf16.mxu0 0
          %532 = vmatmul.mubr.bf16.gmra.mxu0 %v465
          %v533 = vpop.f32.mrf.mxu0
          %v534 = vadd.f32 %v462, %v533
          %v535 = vpop.f32.mrf.mxu0
          %v536 = vpop.f32.mrf.mxu0
          %v537 = vpop.f32.mrf.mxu0
          %538 = vdwg.mxu0
          %v539 = vmax.f32 %v534, 0.0
          %540 = vst [vmem:[%s277] sm:$0xff] %v539
        $region60: #{tpu_custom_call.1} parent=35 // pred_fallthru
          _
        %s541 = sand.u32 %s139, 1
        %s542 = scalar_lea.sflag [#allocation5], %s541
        %s543 = sand.u32 %s139, 1
        %s544 = smul.addr %s543, 8
        %s545 = scalar_lea.vmem [#allocation11], %s544
        // Predicated region
        $region61: #{tpu_custom_call.1} parent=35 // pred_check
          %p546 = pneg %p149
        $region62: #{tpu_custom_call.1} parent=35 // pred_check_branch
          %548 = sbr.rel (%p546) target = $region64
        $region63: #{tpu_custom_call.1} parent=35 // pred_region
          %s550 = ssub.s32 128, 128
          %551 = vsyncadd %s542, %s550
          %s552 = smul.addr %s27, 128
          %s553 = scalar_lea.hbm %s4, %s552
          %s555 = sshll.u32 %s545, 4
          %s556 = int_to_ptr.vmem [resolvable:$true] %s555
          %558 = dma.vmem_to_hbm [thread:$0]  %s556, 128, %s553, %s542
        $region64: #{tpu_custom_call.1} parent=35 // pred_fallthru
          _
      $region36: #{tpu_custom_call.1} parent=5 // pred_fallthru
        _
      %p559 = scmp.le.s32.totalorder 2, %s18
      // Predicated region
      $region65: #{tpu_custom_call.1} parent=5 // pred_check
        %p560 = pneg %p559
      $region66: #{tpu_custom_call.1} parent=5 // pred_check_branch
        %562 = sbr.rel (%p560) target = $region68
      $region67: #{tpu_custom_call.1} parent=5 // pred_region
        %s563 = ssub.s32 %s18, 2
        // Predicated region
        $region69: #{tpu_custom_call.1} parent=67 // pred_check
          %p564 = pneg %p155
        $region70: #{tpu_custom_call.1} parent=67 // pred_check_branch
          %566 = sbr.rel (%p564) target = $region72
        $region71: #{tpu_custom_call.1} parent=67 // pred_region
          %s567 = sand.u32 %s140, 1
          %s568 = scalar_lea.sflag [#allocation5], %s567
          %s569 = sand.u32 %s140, 1
          %s570 = smul.addr %s569, 8
          %s571 = scalar_lea.vmem [#allocation11], %s570
          %572 = dma.done %s568, 128
        $region72: #{tpu_custom_call.1} parent=67 // pred_fallthru
          _
      $region68: #{tpu_custom_call.1} parent=5 // pred_fallthru
        _
    $region6: #{tpu_custom_call.1} parent=1 // loop_footer
      %s22 = sadd.s32 1, %s18
    $region7: #{tpu_custom_call.1} parent=1 // loop_footer_branch
      %17 = sbr.rel target = $region3
    $region8: #{tpu_custom_call.1} parent=1 // loop_exit
      _
    %573 = vsyncpa [#allocation4], 1
    %s574 = scalar_lea.sflag [#allocation4], 1
    %575 = vsyncpa %s574, 1
    %576 = vsyncpa [#allocation7], 1
    %577 = vsyncpa [#allocation10], 1
    %578 = vsyncpa [#allocation5], 1
    %s579 = scalar_lea.sflag [#allocation5], 1
    %580 = vsyncpa %s579, 1

</llo_original>
